<compile_context>
chip_gen: v6e
topology: v6e:2x2x1
jax: 0.10.0
libtpu: 0.0.40
codegen_flags: <defaults>
</compile_context>

<pallas_src>
import functools

import jax
import jax.numpy as jnp
from jax.experimental import pallas as pl
from jax.experimental.pallas import tpu as pltpu


def _enmf_fwd_kernel(u_ref, i_ref, h_ref, o_ref):
    # u_ref, i_ref: (D, TILE)  -- D on sublanes, TILE (pairs) on lanes
    # h_ref:        (D, 1)     -- resident across the grid, lane-broadcast
    # o_ref:        (1, TILE)  -- lane-dense output block
    u = u_ref[...].astype(jnp.float32)   # upcast in-kernel (no-op for f32 tables)
    v = i_ref[...].astype(jnp.float32)
    w = h_ref[...].astype(jnp.float32)
    prod = u * v * w                                       # VPU, fully lane-dense
    o_ref[...] = jnp.sum(prod, axis=0, keepdims=True)      # sublane reduce -> (1, TILE)


def _round_up(x, m):
    return ((x + m - 1) // m) * m


def _choose_tile(n, d, itemsize):
    """Largest lane tile whose double-buffered inputs fit a conservative VMEM budget."""
    budget = 8 * 1024 * 1024                 # safe under v5e 16 MiB / v7x 32 MiB scoped VMEM
    per_pair = 4 * d * itemsize              # 2 inputs x 2 pipeline buffers x d x itemsize
    t = budget // max(1, per_pair)
    t = max(128, min(int(t), 16384))
    t = (t // 128) * 128                     # lanes must be a multiple of 128
    # Don't pad a tiny batch up to a huge tile.
    t = min(t, max(128, _round_up(n, 128)))
    return t


@functools.partial(jax.jit, static_argnames=("tile",))
def enmf_forward(user_table, item_table, h, users, items, *, tile=None):
    """pos_r = einsum('ac,ac,c->a', user_table[users], item_table[items], h)."""
    n = users.shape[0]
    d = user_table.shape[1]
    itemsize = jnp.dtype(user_table.dtype).itemsize
    if tile is None:
        tile = _choose_tile(n, d, itemsize)
    n_pad = _round_up(n, tile)

    # Pad the cheap length-N int32 index vectors (index 0 is a valid row; the
    # padded lanes are sliced off at the end).  Never pad the (N, D) embeddings.
    users_p = jnp.pad(users.astype(jnp.int32), (0, n_pad - n))
    items_p = jnp.pad(items.astype(jnp.int32), (0, n_pad - n))

    # Gather rows, then present them N-on-lanes / D-on-sublanes ((D, n_pad),
    # row-major).  The transpose is wrapper-side layout plumbing; the hot path
    # (multiply + reduce) runs on fully packed vregs inside the kernel.
    u_t = jnp.take(user_table, users_p, axis=0).T          # (D, n_pad)
    i_t = jnp.take(item_table, items_p, axis=0).T          # (D, n_pad)
    h2 = h.reshape(d, 1)                                   # (D, 1), resident

    out = pl.pallas_call(
        _enmf_fwd_kernel,
        out_shape=jax.ShapeDtypeStruct((1, n_pad), jnp.float32),
        grid_spec=pltpu.PrefetchScalarGridSpec(
            num_scalar_prefetch=0,
            grid=(n_pad // tile,),
            in_specs=[
                pl.BlockSpec((d, tile), lambda b: (0, b)),   # u_emb, transposed
                pl.BlockSpec((d, tile), lambda b: (0, b)),   # i_emb, transposed
                pl.BlockSpec((d, 1), lambda b: (0, 0)),      # h (resident)
            ],
            out_specs=pl.BlockSpec((1, tile), lambda b: (0, b)),
        ),
        compiler_params=pltpu.CompilerParams(
            dimension_semantics=("parallel",),               # shard the row grid across TCs
            vmem_limit_bytes=32 * 1024 * 1024,               # explicit, safe on v5e/v6e/v7x
        ),
    )(u_t, i_t, h2)

    return out.reshape(n_pad)[:n]


def xavier_uniform(key, shape, dtype=jnp.float32):
    """Matches torch.nn.init.xavier_uniform_ for a 2-D weight (limit symmetric in fans)."""
    limit = jnp.sqrt(6.0 / (shape[0] + shape[1]))
    return jax.random.uniform(key, shape, dtype=dtype, minval=-limit, maxval=limit)


if __name__ == "__main__":
    # Model hyper-params (small, synthetic).
    user_count, item_count, embed_dim = 64, 128, 32
    batch_n = 8

    key = jax.random.PRNGKey(0)
    k_u, k_i, k_users, k_items = jax.random.split(key, 4)

    # Deterministic parameter init (mirrors ENMF.__init__; dropout_prob=None).
    user_table = xavier_uniform(k_u, (user_count, embed_dim))
    item_table = xavier_uniform(k_i, (item_count, embed_dim))
    h = jnp.full((embed_dim,), 0.01, dtype=jnp.float32)

    users = jax.random.randint(k_users, (batch_n,), 0, user_count, dtype=jnp.int32)
    items = jax.random.randint(k_items, (batch_n,), 0, item_count, dtype=jnp.int32)

    pos_r = enmf_forward(user_table, item_table, h, users, items)
    pos_r = jax.block_until_ready(pos_r)

    # Reference check (pure JAX) of the same forward semantics.
    ref = jnp.einsum(
        "ac,ac,c->a",
        jnp.take(user_table, users, axis=0),
        jnp.take(item_table, items, axis=0),
        h,
    )
    assert pos_r.shape == (batch_n,) and pos_r.dtype == jnp.float32
    assert jnp.allclose(pos_r, ref, atol=1e-5, rtol=1e-5), (pos_r, ref)

    print("KERNEL_OK")
</pallas_src>

<mosaic_0001>
module attributes {stable_mosaic.version = 11 : i64} {
  func.func @_enmf_fwd_kernel(%arg0: i32, %arg1: memref<32x128xf32, #tpu.memory_space<vmem>>, %arg2: memref<32x128xf32, #tpu.memory_space<vmem>>, %arg3: memref<32x1xf32, #tpu.memory_space<vmem>>, %arg4: memref<1x128xf32, #tpu.memory_space<vmem>>) attributes {dimension_semantics = [#tpu.dimension_semantics<parallel>], iteration_bounds = array<i64: 1>, scalar_prefetch = 0 : i64, scratch_operands = 0 : i64, tpu.core_type = #tpu.core_type<tc>, window_params = [{transform_indices = @transform_0, window_bounds = array<i64: 32, 128>}, {transform_indices = @transform_1, window_bounds = array<i64: 32, 128>}, {pipeline_mode = #tpu.pipeline_mode<synchronous>, transform_indices = @transform_2, window_bounds = array<i64: 32, 1>}, {transform_indices = @transform_3, window_bounds = array<i64: 1, 128>}]} {
    %c0 = arith.constant 0 : index
    %c0_0 = arith.constant 0 : index
    %0 = vector.load %arg1[%c0, %c0_0] : memref<32x128xf32, #tpu.memory_space<vmem>>, vector<32x128xf32>
    %c0_1 = arith.constant 0 : index
    %c0_2 = arith.constant 0 : index
    %1 = vector.load %arg2[%c0_1, %c0_2] : memref<32x128xf32, #tpu.memory_space<vmem>>, vector<32x128xf32>
    %c0_3 = arith.constant 0 : index
    %c0_4 = arith.constant 0 : index
    %2 = vector.load %arg3[%c0_3, %c0_4] : memref<32x1xf32, #tpu.memory_space<vmem>>, vector<32x1xf32>
    %3 = arith.mulf %0, %1 : vector<32x128xf32>
    %4 = vector.broadcast %2 : vector<32x1xf32> to vector<32x128xf32>
    %5 = arith.mulf %3, %4 : vector<32x128xf32>
    %cst = arith.constant dense<0.000000e+00> : vector<128xf32>
    %6 = vector.multi_reduction <add>, %5, %cst [0] : vector<32x128xf32> to vector<128xf32>
    %7 = vector.shape_cast %6 : vector<128xf32> to vector<1x128xf32>
    %c0_5 = arith.constant 0 : index
    %c0_6 = arith.constant 0 : index
    %8 = vector.load %arg4[%c0_5, %c0_6] : memref<1x128xf32, #tpu.memory_space<vmem>>, vector<1x128xf32>
    tpu.vector_store %arg4[%c0_5, %c0_6], %7 {strides = array<i32>} : memref<1x128xf32, #tpu.memory_space<vmem>>, vector<1x128xf32>,
    return
  }
  func.func @transform_0(%arg0: i32) -> (i32, i32) {
    %c0_i32 = arith.constant 0 : i32
    %c0_i32_0 = arith.constant 0 : i32
    return %c0_i32, %arg0 : i32, i32
  }
  func.func @transform_1(%arg0: i32) -> (i32, i32) {
    %c0_i32 = arith.constant 0 : i32
    %c0_i32_0 = arith.constant 0 : i32
    return %c0_i32, %arg0 : i32, i32
  }
  func.func @transform_2(%arg0: i32) -> (i32, i32) {
    %c0_i32 = arith.constant 0 : i32
    %c0_i32_0 = arith.constant 0 : i32
    %c0_i32_1 = arith.constant 0 : i32
    return %c0_i32, %c0_i32_0 : i32, i32
  }
  func.func @transform_3(%arg0: i32) -> (i32, i32) {
    %c0_i32 = arith.constant 0 : i32
    %c0_i32_0 = arith.constant 0 : i32
    return %c0_i32, %arg0 : i32, i32
  }
}

</mosaic_0001>

<llo_original>
// kernel: enmf_forward.1
$region0: #{enmf_forward.1}
  #allocation0 [shape = 'u32[]', space=smem, size = 0x4, offset = 0x4, fixed_abs, tag = 'smem constant byte address 0x4 - core index']
  #allocation1 [shape = 'u32[144,128]{1,0:T(1,128)}', space=vmem, size = 0x12000, scoped, tag = 'internal scratch']
  %s0 = inlined_call_operand.vmem [shape: f32[32,128], index: 0, kind: input, shape index: {}]
  %s1 = inlined_call_operand.vmem [shape: f32[32,128], index: 1, kind: input, shape index: {}]
  %s2 = inlined_call_operand.vmem [shape: f32[32,1], index: 2, kind: input, shape index: {}]
  %s3 = inlined_call_operand.vmem [shape: f32[1,128], index: 3, kind: output, shape index: {}]
  %s4 = sld [smem:[#allocation0]]
  $region22: #{enmf_forward.1} parent=0
    _
  %s6 = ssub.s32 1, %s4
  %s7 = scalar_select 0, %s6, %s4
  // Predicated region
  $region2: #{enmf_forward.1} parent=0 // pred_check
    _
  $region3: #{enmf_forward.1} parent=0 // pred_check_branch
    %9 = sbr.rel (0) target = $region5
  $region4: #{enmf_forward.1} parent=0 // pred_region
    _
  $region5: #{enmf_forward.1} parent=0 // pred_fallthru
    _
  // Predicated region
  $region6: #{enmf_forward.1} parent=0 // pred_check
    _
  $region7: #{enmf_forward.1} parent=0 // pred_check_branch
    %11 = sbr.rel (0) target = $region9
  $region8: #{enmf_forward.1} parent=0 // pred_region
    _
  $region9: #{enmf_forward.1} parent=0 // pred_fallthru
    _
  // Predicated region
  $region10: #{enmf_forward.1} parent=0 // pred_check
    _
  $region11: #{enmf_forward.1} parent=0 // pred_check_branch
    %13 = sbr.rel (0) target = $region13
  $region12: #{enmf_forward.1} parent=0 // pred_region
    _
  $region13: #{enmf_forward.1} parent=0 // pred_fallthru
    _
  %v14 = vld [vmem:[%s0] sm:$0xff]
  %v15 = vld [vmem:[%s0 + $0x8] sm:$0xff]
  %v16 = vld [vmem:[%s0 + $0x10] sm:$0xff]
  %v17 = vld [vmem:[%s0 + $0x18] sm:$0xff]
  %v18 = vld [vmem:[%s1] sm:$0xff]
  %v19 = vld [vmem:[%s1 + $0x8] sm:$0xff]
  %v20 = vld [vmem:[%s1 + $0x10] sm:$0xff]
  %v21 = vld [vmem:[%s1 + $0x18] sm:$0xff]
  %v22 = vld [vmem:[%s2] sm:$0xff]
  %v23 = vld [vmem:[%s2 + $0x8] sm:$0xff]
  %v24 = vld [vmem:[%s2 + $0x10] sm:$0xff]
  %v25 = vld [vmem:[%s2 + $0x18] sm:$0xff]
  %v26 = vmul.f32 %v14, %v18
  %v27 = vmul.f32 %v15, %v19
  %v28 = vmul.f32 %v16, %v20
  %v29 = vmul.f32 %v17, %v21
  %31 = vset.pattern.permute.xlu0 0
  %32 = vperm.xlu0 %31, %v22
  %v33 = vpop.permute.xlu0 %32
  %36 = vset.pattern.permute.xlu0 0
  %37 = vperm.xlu0 %36, %v23
  %v38 = vpop.permute.xlu0 %37
  %41 = vset.pattern.permute.xlu0 0
  %42 = vperm.xlu0 %41, %v24
  %v43 = vpop.permute.xlu0 %42
  %46 = vset.pattern.permute.xlu0 0
  %47 = vperm.xlu0 %46, %v25
  %v48 = vpop.permute.xlu0 %47
  %v50 = vmul.f32 %v26, %v33
  %v51 = vmul.f32 %v27, %v38
  %v52 = vmul.f32 %v28, %v43
  %v53 = vmul.f32 %v29, %v48
  %v54 = vadd.f32 %v50, %v51
  %v55 = vadd.f32 %v54, %v52
  %v56 = vadd.f32 %v55, %v53
  %v57 = vrot.slane %v56, 4
  %v58 = vadd.f32 %v56, %v57
  %v59 = vrot.slane %v58, 2
  %v60 = vadd.f32 %v58, %v59
  %v61 = vrot.slane %v60, 1
  %v62 = vadd.f32 %v60, %v61
  %63 = vst [vmem:[%s3] sm:$0x1] %v62
  // Predicated region
  $region14: #{enmf_forward.1} parent=0 // pred_check
    _
  $region15: #{enmf_forward.1} parent=0 // pred_check_branch
    %65 = sbr.rel (0) target = $region17
  $region16: #{enmf_forward.1} parent=0 // pred_region
    _
  $region17: #{enmf_forward.1} parent=0 // pred_fallthru
    _
  // Predicated region
  $region18: #{enmf_forward.1} parent=0 // pred_check
    _
  $region19: #{enmf_forward.1} parent=0 // pred_check_branch
    %67 = sbr.rel (0) target = $region21
  $region20: #{enmf_forward.1} parent=0 // pred_region
    _
  $region21: #{enmf_forward.1} parent=0 // pred_fallthru
    _

</llo_original>
